<compile_context>
chip_gen: v6e
topology: v6e:2x2x1
jax: 0.10.0
libtpu: 0.0.40
codegen_flags: <defaults>
</compile_context>

<pallas_src>
import functools

import jax
import jax.numpy as jnp
from jax.experimental import pallas as pl
from jax.experimental.pallas import tpu as pltpu

LANES = 128  # TPU vreg lane width


def _round_up(x, m):
    return ((x + m - 1) // m) * m


def _eup_supports_bf16():
    """bf16 VPU/EUP exists on v6e/v7x; v5e and older are f32-only."""
    try:
        kind = jax.devices()[0].device_kind.lower()
    except Exception:
        return False
    return not any(old in kind for old in ("v2", "v3", "v4", "v5"))


def task_attention_kernel(x_ref, w_ref, b_ref, seg_ref, o_ref, *, d_k, bf16_exp):
    """One packed row-tile of the fused task-attention forward.

    x_ref  : (tm, 128)  input rows, `128 // d_k` logical rows packed per row
    w_ref  : (128, 128) bf16 block-diag( (Wk^T Wq^T) / int(sqrt(d_k)) )
    b_ref  : (1, 128)   f32  tile( (bk Wq^T + bq) / int(sqrt(d_k)) )
    seg_ref: (128, 128) bf16 block indicator: seg[i, j] = 1 iff i//d_k == j//d_k
    o_ref  : (tm, 128)  output rows (same packing as x)

    OOB rows of a ragged last block contain stale VMEM data; every reduction /
    matmul here is per-row, so stale rows never contaminate valid rows, and the
    Pallas pipeline drops their stores.
    """
    x = x_ref[...]                                           # (tm, 128)

    # Fused, pre-scaled similarity: one bf16 MXU matmul (f32 accumulate).
    sim = jnp.dot(x.astype(jnp.bfloat16), w_ref[...],
                  preferred_element_type=jnp.float32) + b_ref[...]

    # ---- segmented softmax over each d_k-wide lane group (lane-dense) ----
    # XLU roll-tree window max: lane d_k*k ends up holding
    # max(sim[d_k*k : d_k*(k+1)]).
    m = sim
    d = 1
    while d < d_k:
        m = jnp.maximum(m, pltpu.roll(m, LANES - d, 1))      # roll(-d) on lanes
        d *= 2
    lane = jax.lax.broadcasted_iota(jnp.int32, (1, LANES), 1)
    seg_start = (lane % d_k == 0).astype(jnp.float32)        # (1, 128)
    # Broadcast the segment-anchor max to every lane of its segment via the
    # (bf16, single-pass) block-indicator matmul.
    c = jnp.dot((m * seg_start).astype(jnp.bfloat16), seg_ref[...],
                preferred_element_type=jnp.float32)

    z = sim - c
    if bf16_exp:
        z = z.astype(jnp.bfloat16)                           # halves EUP pushes
    e = jnp.exp(z)

    # Segmented sum + broadcast in one bf16 matmul; EUP approx reciprocal.
    denom = jnp.dot(e.astype(jnp.bfloat16), seg_ref[...],
                    preferred_element_type=jnp.float32)
    attn = e.astype(jnp.float32) * pl.reciprocal(denom, approx=True)

    # result = attention * X  (elementwise, packing-invariant)
    o_ref[...] = (attn * x).astype(o_ref.dtype)


def task_attention_forward(x, wq_w, wq_b, wk_w, wk_b, *, d_k,
                           tile_packed_rows=2048, bf16_exp=None):
    """x: (B, S, d_v) with d_v == d_k. Weights are PyTorch-layout (out, in)."""
    B, S, d_v = x.shape
    assert d_v == d_k, "module requires d_v == d_k for Wq(keys) to typecheck"
    # TODO(synk): packed lane-dense path requires d_k | 128; for other d_k a
    # (tm, d_k)-blocked fallback would be needed.
    assert LANES % d_k == 0, "this kernel packs rows into 128 lanes (d_k | 128)"
    pack = LANES // d_k

    if bf16_exp is None:
        bf16_exp = _eup_supports_bf16()

    wq_w = jnp.asarray(wq_w, jnp.float32)
    wq_b = jnp.asarray(wq_b, jnp.float32)
    wk_w = jnp.asarray(wk_w, jnp.float32)
    wk_b = jnp.asarray(wk_b, jnp.float32)

    # Fold both linears and the 1/int(sqrt(d_k)) scale (matches int(np.sqrt)).
    inv_scale = 1.0 / float(int(d_k ** 0.5))
    w_fused = (wk_w.T @ wq_w.T) * inv_scale                  # (d_v, d_k)
    b_fused = (wk_b @ wq_w.T + wq_b) * inv_scale             # (d_k,)

    eye = jnp.eye(pack, dtype=jnp.float32)
    w_bd = jnp.kron(eye, w_fused).astype(jnp.bfloat16)       # (128, 128) bf16
    b_tile = jnp.tile(b_fused, pack).reshape(1, LANES).astype(jnp.float32)
    # Exact 0/1 indicator -> bf16 is lossless and single-pass on the MXU.
    seg = jnp.kron(eye, jnp.ones((d_k, d_k), jnp.float32)).astype(jnp.bfloat16)

    rows = B * S
    x2 = x.reshape(rows, d_v)
    if x2.dtype != jnp.float32 and x2.dtype != jnp.bfloat16:
        x2 = x2.astype(jnp.float32)

    rows_packed = pl.cdiv(rows, pack)
    if rows_packed * pack != rows:
        # Only when B*S is not a multiple of pack: pad < pack rows (one copy).
        x2 = jnp.pad(x2, ((0, rows_packed * pack - rows), (0, 0)))
    xp = x2.reshape(rows_packed, LANES)      # free row-major reinterpretation

    # --- tiling: big tiles, ragged last block, >=2 steps for v7x megacore ---
    tm = min(tile_packed_rows, _round_up(rows_packed, 8))
    if rows_packed >= 256 and rows_packed <= tm:
        tm = _round_up(pl.cdiv(rows_packed, 2), 8)           # feed both TCs
    if rows_packed <= tm:
        tm = rows_packed                     # single full-extent block
    grid = (pl.cdiv(rows_packed, tm),)

    itemsize = jnp.dtype(x2.dtype).itemsize
    cost = pl.CostEstimate(
        flops=3 * 2 * rows_packed * LANES * LANES,
        transcendentals=rows_packed * LANES,
        bytes_accessed=(2 * rows_packed * LANES * itemsize
                        + 2 * LANES * LANES * 2 + LANES * 4),
    )

    kernel = functools.partial(task_attention_kernel, d_k=d_k, bf16_exp=bf16_exp)

    out_p = pl.pallas_call(
        kernel,
        out_shape=jax.ShapeDtypeStruct((rows_packed, LANES), x2.dtype),
        grid_spec=pltpu.PrefetchScalarGridSpec(
            num_scalar_prefetch=0,
            grid=grid,
            in_specs=[
                pl.BlockSpec((tm, LANES), lambda i: (i, 0)),        # packed X
                # Constant index maps -> weight/bias/indicator stay resident in
                # VMEM (~48 KiB total); not re-fetched per step.
                pl.BlockSpec((LANES, LANES), lambda i: (0, 0)),     # W_bd (bf16)
                pl.BlockSpec((1, LANES), lambda i: (0, 0)),         # b_tile (f32)
                pl.BlockSpec((LANES, LANES), lambda i: (0, 0)),     # seg (bf16)
            ],
            out_specs=pl.BlockSpec((tm, LANES), lambda i: (i, 0)),
        ),
        compiler_params=pltpu.CompilerParams(
            dimension_semantics=("parallel",)),  # megacore/v7x sharding
        cost_estimate=cost,
    )(xp, w_bd, b_tile, seg)

    out = out_p.reshape(rows_packed * pack, d_k)
    if rows_packed * pack != rows:
        out = out[:rows]
    return out.reshape(B, S, d_k)


def _reference(x, wq_w, wq_b, wk_w, wk_b, d_k):
    """Pure-JAX f32 reference mirroring the PyTorch forward."""
    keys = jnp.einsum("bsv,kv->bsk", x, wk_w) + wk_b
    sim = (jnp.einsum("bsv,kv->bsk", keys, wq_w) + wq_b) / int(d_k ** 0.5)
    attn = jax.nn.softmax(sim, axis=-1)
    return attn * x


if __name__ == "__main__":
    # Small deterministic setup: d_v == d_k (required by the module's math).
    B, S = 2, 8
    d_v = d_k = 32

    key = jax.random.PRNGKey(0)
    k_x, k_wq, k_bq, k_wk, k_bk = jax.random.split(key, 5)

    # PyTorch Linear style init: U(-1/sqrt(in), +1/sqrt(in)).
    bound = 1.0 / (d_v ** 0.5)
    wq_w = jax.random.uniform(k_wq, (d_k, d_v), jnp.float32, -bound, bound)
    wq_b = jax.random.uniform(k_bq, (d_k,), jnp.float32, -bound, bound)
    wk_w = jax.random.uniform(k_wk, (d_k, d_v), jnp.float32, -bound, bound)
    wk_b = jax.random.uniform(k_bk, (d_k,), jnp.float32, -bound, bound)

    x = jax.random.normal(k_x, (B, S, d_v), jnp.float32)

    out = task_attention_forward(x, wq_w, wq_b, wk_w, wk_b, d_k=d_k)
    out = jax.block_until_ready(out)

    ref = _reference(x, wq_w, wq_b, wk_w, wk_b, d_k)
    assert out.shape == (B, S, d_k)
    # Tolerance loosened vs pure-f32 parity: bf16 MXU operands, (chip-gated)
    # bf16 exp and the approx reciprocal introduce ~bf16-eps-level error; the
    # softmax rows do not sum exactly to 1 (~1e-3 rel).
    assert jnp.allclose(out, ref, atol=5e-3, rtol=5e-2), "mismatch vs reference"

    # TODO(synk): `query = Wq(X)` in the original forward is dead code (never
    # used in the output) and is intentionally not computed in the kernel.
    print("KERNEL_OK")
</pallas_src>

<mosaic_0001>
module attributes {stable_mosaic.version = 11 : i64} {
  func.func @task_attention_kernel(%arg0: i32, %arg1: memref<4x128xf32, #tpu.memory_space<vmem>>, %arg2: memref<128x128xbf16, #tpu.memory_space<vmem>>, %arg3: memref<1x128xf32, #tpu.memory_space<vmem>>, %arg4: memref<128x128xbf16, #tpu.memory_space<vmem>>, %arg5: memref<4x128xf32, #tpu.memory_space<vmem>>) attributes {dimension_semantics = [#tpu.dimension_semantics<parallel>], iteration_bounds = array<i64: 1>, scalar_prefetch = 0 : i64, scratch_operands = 0 : i64, tpu.core_type = #tpu.core_type<tc>, window_params = [{transform_indices = @transform_0, window_bounds = array<i64: 4, 128>}, {pipeline_mode = #tpu.pipeline_mode<synchronous>, transform_indices = @transform_1, window_bounds = array<i64: 128, 128>}, {pipeline_mode = #tpu.pipeline_mode<synchronous>, transform_indices = @transform_2, window_bounds = array<i64: 1, 128>}, {pipeline_mode = #tpu.pipeline_mode<synchronous>, transform_indices = @transform_3, window_bounds = array<i64: 128, 128>}, {transform_indices = @transform_4, window_bounds = array<i64: 4, 128>}]} {
    %c0 = arith.constant 0 : index
    %c0_0 = arith.constant 0 : index
    %0 = vector.load %arg1[%c0, %c0_0] : memref<4x128xf32, #tpu.memory_space<vmem>>, vector<4x128xf32>
    %1 = arith.truncf %0 : vector<4x128xf32> to vector<4x128xbf16>
    %c0_1 = arith.constant 0 : index
    %c0_2 = arith.constant 0 : index
    %2 = vector.load %arg2[%c0_1, %c0_2] : memref<128x128xbf16, #tpu.memory_space<vmem>>, vector<128x128xbf16>
    %cst = arith.constant dense<0.000000e+00> : vector<4x128xf32>
    %3 = tpu.matmul %1, %2, %cst {dimension_numbers = #tpu.dot_dimension_numbers<[1], [0], [0], [1], [0, 0, 1, 1], [], []>} : vector<4x128xbf16>, vector<128x128xbf16>, vector<4x128xf32> -> vector<4x128xf32>
    %c0_3 = arith.constant 0 : index
    %c0_4 = arith.constant 0 : index
    %4 = vector.load %arg3[%c0_3, %c0_4] : memref<1x128xf32, #tpu.memory_space<vmem>>, vector<1x128xf32>
    %5 = vector.broadcast %4 : vector<1x128xf32> to vector<4x128xf32>
    %6 = arith.addf %3, %5 : vector<4x128xf32>
    %c127_i32 = arith.constant 127 : i32
    %7 = tpu.dynamic_rotate %6 by %c127_i32 dim 1 : vector<4x128xf32>, i32 -> vector<4x128xf32>
    %8 = arith.maximumf %6, %7 : vector<4x128xf32>
    %c126_i32 = arith.constant 126 : i32
    %9 = tpu.dynamic_rotate %8 by %c126_i32 dim 1 : vector<4x128xf32>, i32 -> vector<4x128xf32>
    %10 = arith.maximumf %8, %9 : vector<4x128xf32>
    %c124_i32 = arith.constant 124 : i32
    %11 = tpu.dynamic_rotate %10 by %c124_i32 dim 1 : vector<4x128xf32>, i32 -> vector<4x128xf32>
    %12 = arith.maximumf %10, %11 : vector<4x128xf32>
    %c120_i32 = arith.constant 120 : i32
    %13 = tpu.dynamic_rotate %12 by %c120_i32 dim 1 : vector<4x128xf32>, i32 -> vector<4x128xf32>
    %14 = arith.maximumf %12, %13 : vector<4x128xf32>
    %c112_i32 = arith.constant 112 : i32
    %15 = tpu.dynamic_rotate %14 by %c112_i32 dim 1 : vector<4x128xf32>, i32 -> vector<4x128xf32>
    %16 = arith.maximumf %14, %15 : vector<4x128xf32>
    %17 = tpu.iota {dimensions = array<i32: 1>} : vector<1x128xi32>
    %c32_i32 = arith.constant 32 : i32
    %c0_i32 = arith.constant 0 : i32
    %18 = arith.cmpi eq, %c32_i32, %c0_i32 : i32
    %c1_i32 = arith.constant 1 : i32
    %19 = arith.select %18, %c1_i32, %c32_i32 : i32
    %20 = vector.broadcast %19 : i32 to vector<1x128xi32>
    %21 = arith.remsi %17, %20 : vector<1x128xi32>
    %c0_i32_5 = arith.constant 0 : i32
    %22 = vector.broadcast %c0_i32_5 : i32 to vector<1x128xi32>
    %23 = arith.cmpi ne, %21, %22 : vector<1x128xi32>
    %c0_i32_6 = arith.constant 0 : i32
    %24 = vector.broadcast %c0_i32_6 : i32 to vector<1x128xi32>
    %25 = arith.cmpi slt, %21, %24 : vector<1x128xi32>
    %c0_i32_7 = arith.constant 0 : i32
    %26 = arith.cmpi slt, %19, %c0_i32_7 : i32
    %27 = vector.broadcast %26 : i1 to vector<1x128xi1>
    %28 = vector.broadcast %27 : vector<1x128xi1> to vector<1x128xi1>
    %29 = arith.xori %25, %28 : vector<1x128xi1>
    %30 = arith.andi %29, %23 : vector<1x128xi1>
    %31 = vector.broadcast %19 : i32 to vector<1x128xi32>
    %32 = arith.addi %21, %31 : vector<1x128xi32>
    %33 = arith.select %30, %32, %21 : vector<1x128xi1>, vector<1x128xi32>
    %c0_i32_8 = arith.constant 0 : i32
    %34 = vector.broadcast %c0_i32_8 : i32 to vector<1x128xi32>
    %35 = arith.cmpi eq, %33, %34 : vector<1x128xi32>
    %36 = arith.extui %35 : vector<1x128xi1> to vector<1x128xi32>
    %37 = arith.sitofp %36 : vector<1x128xi32> to vector<1x128xf32>
    %38 = vector.broadcast %37 : vector<1x128xf32> to vector<4x128xf32>
    %39 = arith.mulf %16, %38 : vector<4x128xf32>
    %40 = arith.truncf %39 : vector<4x128xf32> to vector<4x128xbf16>
    %c0_9 = arith.constant 0 : index
    %c0_10 = arith.constant 0 : index
    %41 = vector.load %arg4[%c0_9, %c0_10] : memref<128x128xbf16, #tpu.memory_space<vmem>>, vector<128x128xbf16>
    %cst_11 = arith.constant dense<0.000000e+00> : vector<4x128xf32>
    %42 = tpu.matmul %40, %41, %cst_11 {dimension_numbers = #tpu.dot_dimension_numbers<[1], [0], [0], [1], [0, 0, 1, 1], [], []>} : vector<4x128xbf16>, vector<128x128xbf16>, vector<4x128xf32> -> vector<4x128xf32>
    %43 = arith.subf %6, %42 : vector<4x128xf32>
    %44 = arith.truncf %43 : vector<4x128xf32> to vector<4x128xbf16>
    %45 = math.exp %44 : vector<4x128xbf16>
    %c0_12 = arith.constant 0 : index
    %c0_13 = arith.constant 0 : index
    %46 = vector.load %arg4[%c0_12, %c0_13] : memref<128x128xbf16, #tpu.memory_space<vmem>>, vector<128x128xbf16>
    %cst_14 = arith.constant dense<0.000000e+00> : vector<4x128xf32>
    %47 = tpu.matmul %45, %46, %cst_14 {dimension_numbers = #tpu.dot_dimension_numbers<[1], [0], [0], [1], [0, 0, 1, 1], [], []>} : vector<4x128xbf16>, vector<128x128xbf16>, vector<4x128xf32> -> vector<4x128xf32>
    %48 = arith.extf %45 : vector<4x128xbf16> to vector<4x128xf32>
    %49 = tpu.reciprocal %47 {approx = true} : vector<4x128xf32> -> vector<4x128xf32>
    %50 = arith.mulf %48, %49 : vector<4x128xf32>
    %51 = arith.mulf %50, %0 : vector<4x128xf32>
    %c0_15 = arith.constant 0 : index
    %c0_16 = arith.constant 0 : index
    %52 = vector.load %arg5[%c0_15, %c0_16] : memref<4x128xf32, #tpu.memory_space<vmem>>, vector<4x128xf32>
    tpu.vector_store %arg5[%c0_15, %c0_16], %51 {strides = array<i32>} : memref<4x128xf32, #tpu.memory_space<vmem>>, vector<4x128xf32>,
    return
  }
  func.func @transform_0(%arg0: i32) -> (i32, i32) {
    %c0_i32 = arith.constant 0 : i32
    %c0_i32_0 = arith.constant 0 : i32
    return %arg0, %c0_i32 : i32, i32
  }
  func.func @transform_1(%arg0: i32) -> (i32, i32) {
    %c0_i32 = arith.constant 0 : i32
    %c0_i32_0 = arith.constant 0 : i32
    %c0_i32_1 = arith.constant 0 : i32
    return %c0_i32, %c0_i32_0 : i32, i32
  }
  func.func @transform_2(%arg0: i32) -> (i32, i32) {
    %c0_i32 = arith.constant 0 : i32
    %c0_i32_0 = arith.constant 0 : i32
    %c0_i32_1 = arith.constant 0 : i32
    return %c0_i32, %c0_i32_0 : i32, i32
  }
  func.func @transform_3(%arg0: i32) -> (i32, i32) {
    %c0_i32 = arith.constant 0 : i32
    %c0_i32_0 = arith.constant 0 : i32
    %c0_i32_1 = arith.constant 0 : i32
    return %c0_i32, %c0_i32_0 : i32, i32
  }
  func.func @transform_4(%arg0: i32) -> (i32, i32) {
    %c0_i32 = arith.constant 0 : i32
    %c0_i32_0 = arith.constant 0 : i32
    return %arg0, %c0_i32 : i32, i32
  }
}

</mosaic_0001>

<llo_original>
// kernel: tpu_custom_call.1
$region0: #{tpu_custom_call.1}
  #allocation0 [shape = 'u32[]', space=smem, size = 0x4, offset = 0x4, fixed_abs, tag = 'smem constant byte address 0x4 - core index']
  #allocation1 [shape = 'u32[144,128]{1,0:T(1,128)}', space=vmem, size = 0x12000, scoped, tag = 'internal scratch']
  %s0 = inlined_call_operand.hbm [shape: f32[4,128], index: 0, kind: input, shape index: {}]
  %s1 = inlined_call_operand.hbm [shape: bf16[128,128], index: 1, kind: input, shape index: {}]
  %s2 = inlined_call_operand.vmem [shape: f32[1,128], index: 2, kind: input, shape index: {}]
  %s3 = inlined_call_operand.hbm [shape: bf16[128,128], index: 3, kind: input, shape index: {}]
  %s4 = inlined_call_operand.hbm [shape: f32[4,128], index: 4, kind: output, shape index: {}]
  %s5 = sld [smem:[#allocation0]]
  $region38: #{tpu_custom_call.1} parent=0
    _
  %s7 = ssub.s32 1, %s5
  %s8 = scalar_select 0, %s7, %s5
  $region1: #{tpu_custom_call.1} parent=0
    #allocation2 [shape = 'u8[2048]{0}', space=vmem, size = 0x800, scoped, tag = 'input window, operand 0, single buffered']
    #allocation3 [shape = 's32[1]{0}', space=sflag, size = 0x4, scoped, tag = 'scoped memory for tpu_custom_call.1']
    #allocation4 [shape = 's32[1]{0}', space=sflag, size = 0x4, scoped, tag = 'scoped memory for tpu_custom_call.1']
    #allocation5 [shape = 'u8[32768]{0}', space=vmem, size = 0x8000, scoped, tag = 'input window, operand 1, single buffered']
    #allocation6 [shape = 's32[1]{0}', space=sflag, size = 0x4, scoped, tag = 'scoped memory for tpu_custom_call.1']
    #allocation7 [shape = 'u8[32768]{0}', space=vmem, size = 0x8000, scoped, tag = 'input window, operand 3, single buffered']
    #allocation8 [shape = 'u8[2048]{0}', space=vmem, size = 0x800, scoped, tag = 'output window, operand 0, single buffered']
    %9 = vsyncpa [#allocation3], 0
    %10 = vsyncpa [#allocation6], 0
    %11 = vsyncpa [#allocation4], 0
    // Predicated region
    $region2: #{tpu_custom_call.1} parent=1 // pred_check
      _
    $region3: #{tpu_custom_call.1} parent=1 // pred_check_branch
      %13 = sbr.rel (0) target = $region5
    $region4: #{tpu_custom_call.1} parent=1 // pred_region
      %s15 = ssub.s32 64, 64
      %16 = vsyncadd [#allocation3], %s15
      %s18 = sshll.u32 [#allocation2], 4
      %s19 = int_to_ptr.vmem [resolvable:$true] %s18
      %21 = dma.hbm_to_vmem [thread:$0]  %s0, 64, %s19, [#allocation3]
    $region5: #{tpu_custom_call.1} parent=1 // pred_fallthru
      _
    // Predicated region
    $region6: #{tpu_custom_call.1} parent=1 // pred_check
      _
    $region7: #{tpu_custom_call.1} parent=1 // pred_check_branch
      %23 = sbr.rel (0) target = $region9
    $region8: #{tpu_custom_call.1} parent=1 // pred_region
      %s25 = ssub.s32 1024, 1024
      %26 = vsyncadd [#allocation6], %s25
      %s27 = sshll.u32 [#allocation5], 4
      %s28 = int_to_ptr.vmem [resolvable:$true] %s27
      %33 = dma.hbm_to_vmem [thread:$0]  %s1, 1024, %s28, [#allocation6], 64, 64, 4
    $region9: #{tpu_custom_call.1} parent=1 // pred_fallthru
      _
    // Predicated region
    $region10: #{tpu_custom_call.1} parent=1 // pred_check
      _
    $region11: #{tpu_custom_call.1} parent=1 // pred_check_branch
      %35 = sbr.rel (0) target = $region13
    $region12: #{tpu_custom_call.1} parent=1 // pred_region
      _
    $region13: #{tpu_custom_call.1} parent=1 // pred_fallthru
      _
    // Predicated region
    $region14: #{tpu_custom_call.1} parent=1 // pred_check
      _
    $region15: #{tpu_custom_call.1} parent=1 // pred_check_branch
      %37 = sbr.rel (0) target = $region17
    $region16: #{tpu_custom_call.1} parent=1 // pred_region
      %s39 = ssub.s32 1024, 1024
      %40 = vsyncadd [#allocation6], %s39
      %s41 = sshll.u32 [#allocation7], 4
      %s42 = int_to_ptr.vmem [resolvable:$true] %s41
      %47 = dma.hbm_to_vmem [thread:$0]  %s3, 1024, %s42, [#allocation6], 64, 64, 4
    $region17: #{tpu_custom_call.1} parent=1 // pred_fallthru
      _
    // Predicated region
    $region18: #{tpu_custom_call.1} parent=1 // pred_check
      _
    $region19: #{tpu_custom_call.1} parent=1 // pred_check_branch
      %49 = sbr.rel (0) target = $region21
    $region20: #{tpu_custom_call.1} parent=1 // pred_region
      %50 = dma.done [#allocation3], 64
    $region21: #{tpu_custom_call.1} parent=1 // pred_fallthru
      _
    // Predicated region
    $region22: #{tpu_custom_call.1} parent=1 // pred_check
      _
    $region23: #{tpu_custom_call.1} parent=1 // pred_check_branch
      %52 = sbr.rel (0) target = $region25
    $region24: #{tpu_custom_call.1} parent=1 // pred_region
      %53 = dma.done [#allocation6], 1024
    $region25: #{tpu_custom_call.1} parent=1 // pred_fallthru
      _
    // Predicated region
    $region26: #{tpu_custom_call.1} parent=1 // pred_check
      _
    $region27: #{tpu_custom_call.1} parent=1 // pred_check_branch
      %55 = sbr.rel (0) target = $region29
    $region28: #{tpu_custom_call.1} parent=1 // pred_region
      %56 = dma.done [#allocation6], 1024
    $region29: #{tpu_custom_call.1} parent=1 // pred_fallthru
      _
    %v58 = vld [vmem:[#allocation2] sm:$0xf]
    %v59 = vpack.c.bf16 %v58, %v58
    %v60 = vld [vmem:[#allocation5] sm:$0xf]
    %v61 = vld [vmem:[#allocation5 + $0x4] sm:$0xf]
    %v62 = vld [vmem:[#allocation5 + $0x8] sm:$0xf]
    %v63 = vld [vmem:[#allocation5 + $0xc] sm:$0xf]
    %v64 = vld [vmem:[#allocation5 + $0x10] sm:$0xf]
    %v65 = vld [vmem:[#allocation5 + $0x14] sm:$0xf]
    %v66 = vld [vmem:[#allocation5 + $0x18] sm:$0xf]
    %v67 = vld [vmem:[#allocation5 + $0x1c] sm:$0xf]
    %v68 = vld [vmem:[#allocation5 + $0x20] sm:$0xf]
    %v69 = vld [vmem:[#allocation5 + $0x24] sm:$0xf]
    %v70 = vld [vmem:[#allocation5 + $0x28] sm:$0xf]
    %v71 = vld [vmem:[#allocation5 + $0x2c] sm:$0xf]
    %v72 = vld [vmem:[#allocation5 + $0x30] sm:$0xf]
    %v73 = vld [vmem:[#allocation5 + $0x34] sm:$0xf]
    %v74 = vld [vmem:[#allocation5 + $0x38] sm:$0xf]
    %v75 = vld [vmem:[#allocation5 + $0x3c] sm:$0xf]
    %v76 = vld [vmem:[%s2] sm:$0x1]
    %v78 = vlaneseq
    %v79 = vshrl.u32 %v78, 7
    %v80 = vsub.s32 0, %v79
    %v81 = vrot.slane %v76, %v80
    %v99 = vunpack.c.l.b16 %v60
    %v100 = vunpack.c.l.b16 %v61
    %v101 = vunpack.c.l.b16 %v62
    %v102 = vunpack.c.l.b16 %v63
    %v103 = vunpack.c.l.b16 %v64
    %v104 = vunpack.c.l.b16 %v65
    %v105 = vunpack.c.l.b16 %v66
    %v106 = vunpack.c.l.b16 %v67
    %v107 = vunpack.c.l.b16 %v68
    %v108 = vunpack.c.l.b16 %v69
    %v109 = vunpack.c.l.b16 %v70
    %v110 = vunpack.c.l.b16 %v71
    %v111 = vunpack.c.l.b16 %v72
    %v112 = vunpack.c.l.b16 %v73
    %v113 = vunpack.c.l.b16 %v74
    %v114 = vunpack.c.l.b16 %v75
    %v115 = vpack.c.b16 %v100, %v99
    %v116 = vpack.c.b16 %v102, %v101
    %v117 = vpack.c.b16 %v104, %v103
    %v118 = vpack.c.b16 %v106, %v105
    %v119 = vpack.c.b16 %v108, %v107
    %v120 = vpack.c.b16 %v110, %v109
    %v121 = vpack.c.b16 %v112, %v111
    %v122 = vpack.c.b16 %v114, %v113
    %131 = vmatprep.subr.bf16.mxu0 0
    %132 = vmatpush1.bf16.msra.mxu0 %v122
    %133 = vmatprep.subr.bf16.mxu0 0
    %134 = vmatpush1.bf16.msra.mxu0 %v121
    %135 = vmatprep.subr.bf16.mxu0 0
    %136 = vmatpush1.bf16.msra.mxu0 %v120
    %137 = vmatprep.subr.bf16.mxu0 0
    %138 = vmatpush1.bf16.msra.mxu0 %v119
    %139 = vmatprep.subr.bf16.mxu0 0
    %140 = vmatpush1.bf16.msra.mxu0 %v118
    %141 = vmatprep.subr.bf16.mxu0 0
    %142 = vmatpush1.bf16.msra.mxu0 %v117
    %143 = vmatprep.subr.bf16.mxu0 0
    %144 = vmatpush1.bf16.msra.mxu0 %v116
    %145 = vmatprep.subr.bf16.mxu0 0
    %146 = vmatpush1.bf16.msra.mxu0 %v115
    %147 = vmatprep.subr.bf16.mxu0 0
    %148 = vmatpush2.bf16.msra.mxu0 0
    %149 = vmatprep.subr.bf16.mxu0 0
    %150 = vmatpush2.bf16.msra.mxu0 0
    %151 = vmatprep.subr.bf16.mxu0 0
    %152 = vmatpush2.bf16.msra.mxu0 0
    %153 = vmatprep.subr.bf16.mxu0 0
    %154 = vmatpush2.bf16.msra.mxu0 0
    %155 = vmatprep.subr.bf16.mxu0 0
    %156 = vmatpush2.bf16.msra.mxu0 0
    %157 = vmatprep.subr.bf16.mxu0 0
    %158 = vmatpush2.bf16.msra.mxu0 0
    %159 = vmatprep.subr.bf16.mxu0 0
    %160 = vmatpush2.bf16.msra.mxu0 0
    %161 = vmatprep.subr.bf16.mxu0 0
    %162 = vmatpush2.bf16.msra.mxu0 0
    %163 = vmatprep.mubr.bf16.mxu0 0
    %164 = vmatmul.mubr.bf16.gmra.mxu0 %v59
    %v165 = vpop.f32.mrf.mxu0
    %v166 = vadd.f32 %v81, %v165
    %v167 = vpop.f32.mrf.mxu0
    %v168 = vpop.f32.mrf.mxu0
    %v169 = vpop.f32.mrf.mxu0
    %170 = vdwg.mxu0
    %171 = vrot.lane.b32.xlu0 %v166, 127
    %v172 = vpop.permute.xlu0 %171
    %v173 = vmax.f32 %v166, %v172
    %174 = vrot.lane.b32.xlu0 %v173, 126
    %v175 = vpop.permute.xlu0 %174
    %v176 = vmax.f32 %v173, %v175
    %177 = vrot.lane.b32.xlu0 %v176, 124
    %v178 = vpop.permute.xlu0 %177
    %v179 = vmax.f32 %v176, %v178
    %180 = vrot.lane.b32.xlu0 %v179, 120
    %v181 = vpop.permute.xlu0 %180
    %v182 = vmax.f32 %v179, %v181
    %183 = vrot.lane.b32.xlu0 %v182, 112
    %v184 = vpop.permute.xlu0 %183
    %v185 = vmax.f32 %v182, %v184
    %v186 = vlaneseq
    %v187 = vand.u32 %v186, 127
    %vm188 = vcmp.lt.s32.totalorder %v187, 0
    %v189 = vsub.s32 0, %v187
    %v190 = vsel %vm188, %v189, %v187
    %v191 = vshrl.u32 %v190, 5
    %v192 = vand.u32 %v190, 31
    %v193 = vsub.s32 0, %v192
    %v194 = vsel %vm188, %v193, %v192
    %vm195 = vcmp.ne.s32.totalorder %v194, 0
    %vm196 = vcmp.lt.s32.totalorder %v194, 0
    %vm197 = vmand %vm196, %vm195
    %v198 = vadd.s32 %v194, 32
    %v199 = vsel %vm197, %v198, %v194
    %vm200 = vcmp.eq.s32.totalorder %v199, 0
    %v201 = vsel %vm200, 1, 0
    %v202 = vcvt.s32.f32 %v201
    %v203 = vmul.f32 %v185, %v202
    %v204 = vpack.c.bf16 %v203, %v203
    %v205 = vld [vmem:[#allocation7] sm:$0xf]
    %v206 = vld [vmem:[#allocation7 + $0x4] sm:$0xf]
    %v207 = vld [vmem:[#allocation7 + $0x8] sm:$0xf]
    %v208 = vld [vmem:[#allocation7 + $0xc] sm:$0xf]
    %v209 = vld [vmem:[#allocation7 + $0x10] sm:$0xf]
    %v210 = vld [vmem:[#allocation7 + $0x14] sm:$0xf]
    %v211 = vld [vmem:[#allocation7 + $0x18] sm:$0xf]
    %v212 = vld [vmem:[#allocation7 + $0x1c] sm:$0xf]
    %v213 = vld [vmem:[#allocation7 + $0x20] sm:$0xf]
    %v214 = vld [vmem:[#allocation7 + $0x24] sm:$0xf]
    %v215 = vld [vmem:[#allocation7 + $0x28] sm:$0xf]
    %v216 = vld [vmem:[#allocation7 + $0x2c] sm:$0xf]
    %v217 = vld [vmem:[#allocation7 + $0x30] sm:$0xf]
    %v218 = vld [vmem:[#allocation7 + $0x34] sm:$0xf]
    %v219 = vld [vmem:[#allocation7 + $0x38] sm:$0xf]
    %v220 = vld [vmem:[#allocation7 + $0x3c] sm:$0xf]
    %v237 = vunpack.c.l.b16 %v205
    %v238 = vunpack.c.l.b16 %v206
    %v239 = vunpack.c.l.b16 %v207
    %v240 = vunpack.c.l.b16 %v208
    %v241 = vunpack.c.l.b16 %v209
    %v242 = vunpack.c.l.b16 %v210
    %v243 = vunpack.c.l.b16 %v211
    %v244 = vunpack.c.l.b16 %v212
    %v245 = vunpack.c.l.b16 %v213
    %v246 = vunpack.c.l.b16 %v214
    %v247 = vunpack.c.l.b16 %v215
    %v248 = vunpack.c.l.b16 %v216
    %v249 = vunpack.c.l.b16 %v217
    %v250 = vunpack.c.l.b16 %v218
    %v251 = vunpack.c.l.b16 %v219
    %v252 = vunpack.c.l.b16 %v220
    %v253 = vpack.c.b16 %v238, %v237
    %v254 = vpack.c.b16 %v240, %v239
    %v255 = vpack.c.b16 %v242, %v241
    %v256 = vpack.c.b16 %v244, %v243
    %v257 = vpack.c.b16 %v246, %v245
    %v258 = vpack.c.b16 %v248, %v247
    %v259 = vpack.c.b16 %v250, %v249
    %v260 = vpack.c.b16 %v252, %v251
    %269 = vmatprep.subr.bf16.mxu0 0
    %270 = vmatpush1.bf16.msra.mxu0 %v260
    %271 = vmatprep.subr.bf16.mxu0 0
    %272 = vmatpush1.bf16.msra.mxu0 %v259
    %273 = vmatprep.subr.bf16.mxu0 0
    %274 = vmatpush1.bf16.msra.mxu0 %v258
    %275 = vmatprep.subr.bf16.mxu0 0
    %276 = vmatpush1.bf16.msra.mxu0 %v257
    %277 = vmatprep.subr.bf16.mxu0 0
    %278 = vmatpush1.bf16.msra.mxu0 %v256
    %279 = vmatprep.subr.bf16.mxu0 0
    %280 = vmatpush1.bf16.msra.mxu0 %v255
    %281 = vmatprep.subr.bf16.mxu0 0
    %282 = vmatpush1.bf16.msra.mxu0 %v254
    %283 = vmatprep.subr.bf16.mxu0 0
    %284 = vmatpush1.bf16.msra.mxu0 %v253
    %285 = vmatprep.subr.bf16.mxu0 0
    %286 = vmatpush2.bf16.msra.mxu0 0
    %287 = vmatprep.subr.bf16.mxu0 0
    %288 = vmatpush2.bf16.msra.mxu0 0
    %289 = vmatprep.subr.bf16.mxu0 0
    %290 = vmatpush2.bf16.msra.mxu0 0
    %291 = vmatprep.subr.bf16.mxu0 0
    %292 = vmatpush2.bf16.msra.mxu0 0
    %293 = vmatprep.subr.bf16.mxu0 0
    %294 = vmatpush2.bf16.msra.mxu0 0
    %295 = vmatprep.subr.bf16.mxu0 0
    %296 = vmatpush2.bf16.msra.mxu0 0
    %297 = vmatprep.subr.bf16.mxu0 0
    %298 = vmatpush2.bf16.msra.mxu0 0
    %299 = vmatprep.subr.bf16.mxu0 0
    %300 = vmatpush2.bf16.msra.mxu0 0
    %301 = vmatprep.mubr.bf16.mxu0 0
    %302 = vmatmul.mubr.bf16.gmra.mxu0 %v204
    %v303 = vpop.f32.mrf.mxu0
    %v304 = vadd.f32 0.0, %v303
    %v305 = vpop.f32.mrf.mxu0
    %v306 = vpop.f32.mrf.mxu0
    %v307 = vpop.f32.mrf.mxu0
    %308 = vdwg.mxu0
    %v309 = vsub.f32 %v166, %v304
    %v310 = vpack.c.bf16 %v309, %v309
    %v312 = vmul.bf16 %v310, 1069105081
    %v313 = vpow.bf16.pop %v312
    %314 = vmatprep.subr.bf16.mxu0 0
    %315 = vmatpush1.bf16.msra.mxu0 %v260
    %316 = vmatprep.subr.bf16.mxu0 0
    %317 = vmatpush1.bf16.msra.mxu0 %v259
    %318 = vmatprep.subr.bf16.mxu0 0
    %319 = vmatpush1.bf16.msra.mxu0 %v258
    %320 = vmatprep.subr.bf16.mxu0 0
    %321 = vmatpush1.bf16.msra.mxu0 %v257
    %322 = vmatprep.subr.bf16.mxu0 0
    %323 = vmatpush1.bf16.msra.mxu0 %v256
    %324 = vmatprep.subr.bf16.mxu0 0
    %325 = vmatpush1.bf16.msra.mxu0 %v255
    %326 = vmatprep.subr.bf16.mxu0 0
    %327 = vmatpush1.bf16.msra.mxu0 %v254
    %328 = vmatprep.subr.bf16.mxu0 0
    %329 = vmatpush1.bf16.msra.mxu0 %v253
    %330 = vmatprep.subr.bf16.mxu0 0
    %331 = vmatpush2.bf16.msra.mxu0 0
    %332 = vmatprep.subr.bf16.mxu0 0
    %333 = vmatpush2.bf16.msra.mxu0 0
    %334 = vmatprep.subr.bf16.mxu0 0
    %335 = vmatpush2.bf16.msra.mxu0 0
    %336 = vmatprep.subr.bf16.mxu0 0
    %337 = vmatpush2.bf16.msra.mxu0 0
    %338 = vmatprep.subr.bf16.mxu0 0
    %339 = vmatpush2.bf16.msra.mxu0 0
    %340 = vmatprep.subr.bf16.mxu0 0
    %341 = vmatpush2.bf16.msra.mxu0 0
    %342 = vmatprep.subr.bf16.mxu0 0
    %343 = vmatpush2.bf16.msra.mxu0 0
    %344 = vmatprep.subr.bf16.mxu0 0
    %345 = vmatpush2.bf16.msra.mxu0 0
    %346 = vmatprep.mubr.bf16.mxu0 0
    %347 = vmatmul.mubr.bf16.gmra.mxu0 %v313
    %v348 = vpop.f32.mrf.mxu0
    %v349 = vadd.f32 0.0, %v348
    %v350 = vpop.f32.mrf.mxu0
    %v351 = vpop.f32.mrf.mxu0
    %v352 = vpop.f32.mrf.mxu0
    %353 = vdwg.mxu0
    %v354 = vunpack.c.l.bf16 %v313
    %v355 = vrcp.pop %v349
    %v356 = vmul.f32 %v354, %v355
    %v357 = vmul.f32 %v356, %v58
    %358 = vst [vmem:[#allocation8] sm:$0xf] %v357
    // Predicated region
    $region30: #{tpu_custom_call.1} parent=1 // pred_check
      _
    $region31: #{tpu_custom_call.1} parent=1 // pred_check_branch
      %360 = sbr.rel (0) target = $region33
    $region32: #{tpu_custom_call.1} parent=1 // pred_region
      %s362 = ssub.s32 64, 64
      %363 = vsyncadd [#allocation4], %s362
      %s365 = sshll.u32 [#allocation8], 4
      %s366 = int_to_ptr.vmem [resolvable:$true] %s365
      %368 = dma.vmem_to_hbm [thread:$0]  %s366, 64, %s4, [#allocation4]
    $region33: #{tpu_custom_call.1} parent=1 // pred_fallthru
      _
    // Predicated region
    $region34: #{tpu_custom_call.1} parent=1 // pred_check
      _
    $region35: #{tpu_custom_call.1} parent=1 // pred_check_branch
      %370 = sbr.rel (0) target = $region37
    $region36: #{tpu_custom_call.1} parent=1 // pred_region
      %371 = dma.done [#allocation4], 64
    $region37: #{tpu_custom_call.1} parent=1 // pred_fallthru
      _
    %372 = vsyncpa [#allocation3], 1
    %373 = vsyncpa [#allocation6], 1
    %374 = vsyncpa [#allocation4], 1

</llo_original>
